<compile_context>
chip_gen: v5e
topology: v5e:2x2
jax: 0.10.0
libtpu: 0.0.40
codegen_flags: <defaults>
</compile_context>

<pallas_src>
import jax
import jax.numpy as jnp
from jax import lax
from jax.experimental import pallas as pl
from jax.experimental.pallas import tpu as pltpu


# --------------------------- in-kernel linear solve --------------------------

def _gj_solve(a, b):
    """Solve a @ x = b by Gauss-Jordan elimination.

    `a` is symmetric positive definite (Gram + reg*I with reg > 0), so no
    pivoting is required. Runs entirely on VMEM values inside the kernel.
    """
    m = a.shape[0]
    row_a = lax.broadcasted_iota(jnp.int32, a.shape, 0)
    col_a = lax.broadcasted_iota(jnp.int32, a.shape, 1)
    row_b = lax.broadcasted_iota(jnp.int32, b.shape, 0)
    col_1 = lax.broadcasted_iota(jnp.int32, (1, a.shape[1]), 1)

    def body(k, carry):
        a_k, b_k = carry
        # Dynamic row / column / pivot selection via mask + reduce (no
        # data-dependent slicing -> always lowers cleanly).
        pr_a = jnp.sum(jnp.where(row_a == k, a_k, 0.0), axis=0, keepdims=True)    # [1, m]
        pr_b = jnp.sum(jnp.where(row_b == k, b_k, 0.0), axis=0, keepdims=True)    # [1, r]
        piv = jnp.sum(jnp.where(col_1 == k, pr_a, 0.0), axis=1, keepdims=True)    # [1, 1]
        inv = 1.0 / piv
        npr_a = pr_a * inv
        npr_b = pr_b * inv
        colk = jnp.sum(jnp.where(col_a == k, a_k, 0.0), axis=1, keepdims=True)    # [m, 1]
        a_k = jnp.where(row_a == k, npr_a, a_k - colk * npr_a)
        b_k = jnp.where(row_b == k, npr_b, b_k - colk * npr_b)
        return a_k, b_k

    _, b = lax.fori_loop(0, m, body, (a, b))
    return b


# --------------------------------- kernels -----------------------------------

def _ridge_primal_kernel(reg_ref, x_ref, y_ref, w_ref, b_ref, xa_ref):
    # Primal form: n_samples >= n_dim.
    n, d1 = xa_ref.shape
    d = d1 - 1
    reg = reg_ref[0]

    # Build Xa = [X | 1] with two slice stores into VMEM scratch (no concat).
    xa_ref[:, :d] = x_ref[0]
    xa_ref[:, d:d1] = jnp.ones((n, 1), jnp.float32)
    xa = xa_ref[...]                                   # [n, d+1]
    y = y_ref[0]                                       # [n, o]

    gram = jnp.dot(xa.T, xa, preferred_element_type=jnp.float32)   # [d+1, d+1]
    rhs = jnp.dot(xa.T, y, preferred_element_type=jnp.float32)     # [d+1, o]

    ii = lax.broadcasted_iota(jnp.int32, gram.shape, 0)
    jj = lax.broadcasted_iota(jnp.int32, gram.shape, 1)
    gram = gram + jnp.where(ii == jj, reg, 0.0)

    sol = _gj_solve(gram, rhs)                         # [d+1, o]
    w_ref[0] = sol[:d, :]
    b_ref[0] = sol[d:d1, :]


def _ridge_dual_kernel(reg_ref, x_ref, y_ref, w_ref, b_ref):
    # Dual form: n_samples < n_dim.  Xa Xa^T == X X^T + 1 (ones outer product),
    # so the augmented column is folded algebraically (no concat, no scratch).
    reg = reg_ref[0]
    x = x_ref[0]                                        # [n, d]
    y = y_ref[0]                                        # [n, o]

    gram = jnp.dot(x, x.T, preferred_element_type=jnp.float32) + 1.0   # [n, n]
    ii = lax.broadcasted_iota(jnp.int32, gram.shape, 0)
    jj = lax.broadcasted_iota(jnp.int32, gram.shape, 1)
    gram = gram + jnp.where(ii == jj, reg, 0.0)

    z = _gj_solve(gram, y)                              # [n, o]
    w_ref[0] = jnp.dot(x.T, z, preferred_element_type=jnp.float32)     # [d, o]
    b_ref[0] = jnp.sum(z, axis=0, keepdims=True)                        # [1, o]


# --------------------------------- wrapper -----------------------------------

def ridge_regressor_forward(reprs, x, lam=0.0, reg_coeff=None):
    """RidgeRegressor.forward.

    reprs: [batch, n_samples, n_dim]   (X)
    x:     [batch, n_samples, n_out]   (Y)
    lam:   scalar _lambda parameter (reg = softplus(lam) unless reg_coeff given)
    returns (w [batch, n_dim, n_out], b [batch, 1, n_out])
    """
    if reg_coeff is None:
        # Scalar parameter transform kept in the JAX wrapper (single 0-d op).
        reg_coeff = jax.nn.softplus(jnp.asarray(lam, jnp.float32))
    reg = jnp.asarray(reg_coeff, jnp.float32).reshape((1,))

    reprs = reprs.astype(jnp.float32)
    x = x.astype(jnp.float32)
    bsz, n, d = reprs.shape
    o = x.shape[-1]

    primal = n >= d  # static shape decision, mirrors the PyTorch branch
    kernel = _ridge_primal_kernel if primal else _ridge_dual_kernel
    scratch = [pltpu.VMEM((n, d + 1), jnp.float32)] if primal else []

    w, b = pl.pallas_call(
        kernel,
        out_shape=(
            jax.ShapeDtypeStruct((bsz, d, o), jnp.float32),
            jax.ShapeDtypeStruct((bsz, 1, o), jnp.float32),
        ),
        grid_spec=pltpu.PrefetchScalarGridSpec(
            num_scalar_prefetch=0,
            grid=(bsz,),
            in_specs=[
                pl.BlockSpec(memory_space=pltpu.MemorySpace.SMEM),      # reg scalar
                pl.BlockSpec((1, n, d), lambda i: (i, 0, 0)),           # X tile
                pl.BlockSpec((1, n, o), lambda i: (i, 0, 0)),           # Y tile
            ],
            out_specs=[
                pl.BlockSpec((1, d, o), lambda i: (i, 0, 0)),           # w
                pl.BlockSpec((1, 1, o), lambda i: (i, 0, 0)),           # b
            ],
            scratch_shapes=scratch,
        ),
        compiler_params=pltpu.CompilerParams(
            dimension_semantics=("parallel",),
            vmem_limit_bytes=32 * 1024 * 1024,
        ),
    )(reg, reprs, x)
    return w, b


# ------------------------------ pure-JAX reference ----------------------------

def _ref_forward(X, Y, reg):
    bsz, n, d = X.shape
    ones = jnp.ones((bsz, n, 1), X.dtype)
    Xa = jnp.concatenate([X, ones], axis=-1)
    hp = jax.lax.Precision.HIGHEST
    if n >= d:
        A = jnp.einsum("bnd,bne->bde", Xa, Xa, precision=hp)
        A = A + reg * jnp.eye(d + 1, dtype=X.dtype)
        B = jnp.einsum("bnd,bno->bdo", Xa, Y, precision=hp)
        W = jnp.linalg.solve(A, B)
    else:
        A = jnp.einsum("bnd,bmd->bnm", Xa, Xa, precision=hp)
        A = A + reg * jnp.eye(n, dtype=X.dtype)
        W = jnp.einsum("bnd,bno->bdo", Xa, jnp.linalg.solve(A, Y), precision=hp)
    return W[:, :-1], W[:, -1:]


# ----------------------------------- demo -------------------------------------

if __name__ == "__main__":
    key = jax.random.PRNGKey(0)
    k1, k2, k3, k4 = jax.random.split(key, 4)

    lam = 0.0  # nn.Parameter(lambda_init=0.0)  ->  reg = softplus(0) = ln 2
    reg = jax.nn.softplus(jnp.float32(lam))

    # --- primal branch: n_samples >= n_dim ---
    batch, n_samples, n_dim, n_out = 2, 16, 8, 4
    reprs = jax.random.normal(k1, (batch, n_samples, n_dim), jnp.float32)
    y = jax.random.normal(k2, (batch, n_samples, n_out), jnp.float32)
    w, b = ridge_regressor_forward(reprs, y, lam)
    jax.block_until_ready((w, b))
    assert w.shape == (batch, n_dim, n_out) and b.shape == (batch, 1, n_out)
    rw, rb = _ref_forward(reprs, y, reg)
    assert jnp.allclose(w, rw, rtol=2e-2, atol=2e-2), "primal w mismatch"
    assert jnp.allclose(b, rb, rtol=2e-2, atol=2e-2), "primal b mismatch"

    # --- dual branch: n_samples < n_dim ---
    batch2, n_s2, n_d2, n_o2 = 2, 8, 32, 4
    reprs2 = jax.random.normal(k3, (batch2, n_s2, n_d2), jnp.float32)
    y2 = jax.random.normal(k4, (batch2, n_s2, n_o2), jnp.float32)
    w2, b2 = ridge_regressor_forward(reprs2, y2, lam)
    jax.block_until_ready((w2, b2))
    assert w2.shape == (batch2, n_d2, n_o2) and b2.shape == (batch2, 1, n_o2)
    rw2, rb2 = _ref_forward(reprs2, y2, reg)
    assert jnp.allclose(w2, rw2, rtol=2e-2, atol=2e-2), "dual w mismatch"
    assert jnp.allclose(b2, rb2, rtol=2e-2, atol=2e-2), "dual b mismatch"

    print("KERNEL_OK")
</pallas_src>

<mosaic_0001>
module attributes {stable_mosaic.version = 11 : i64} {
  func.func @_ridge_primal_kernel(%arg0: i32, %arg1: memref<1xf32, #tpu.memory_space<smem>>, %arg2: memref<1x16x8xf32, #tpu.memory_space<vmem>>, %arg3: memref<1x16x4xf32, #tpu.memory_space<vmem>>, %arg4: memref<1x8x4xf32, #tpu.memory_space<vmem>>, %arg5: memref<1x1x4xf32, #tpu.memory_space<vmem>>, %arg6: memref<16x9xf32, #tpu.memory_space<vmem>>) attributes {dimension_semantics = [#tpu.dimension_semantics<parallel>], iteration_bounds = array<i64: 2>, scalar_prefetch = 0 : i64, scratch_operands = 1 : i64, tpu.core_type = #tpu.core_type<tc>, window_params = [{transform_indices = @transform_0, window_bounds = array<i64: 1>}, {transform_indices = @transform_1, window_bounds = array<i64: 1, 16, 8>}, {transform_indices = @transform_2, window_bounds = array<i64: 1, 16, 4>}, {transform_indices = @transform_3, window_bounds = array<i64: 1, 8, 4>}, {transform_indices = @transform_4, window_bounds = array<i64: 1, 1, 4>}]} {
    %c0 = arith.constant 0 : index
    %0 = memref.load %arg1[%c0] : memref<1xf32, #tpu.memory_space<smem>>
    %c0_0 = arith.constant 0 : index
    %c0_1 = arith.constant 0 : index
    %c0_2 = arith.constant 0 : index
    %1 = vector.load %arg2[%c0_0, %c0_1, %c0_2] : memref<1x16x8xf32, #tpu.memory_space<vmem>>, vector<1x16x8xf32>
    %2 = vector.shape_cast %1 : vector<1x16x8xf32> to vector<16x8xf32>
    %c0_3 = arith.constant 0 : index
    %c0_4 = arith.constant 0 : index
    %3 = vector.load %arg6[%c0_3, %c0_4] : memref<16x9xf32, #tpu.memory_space<vmem>>, vector<16x8xf32>
    tpu.vector_store %arg6[%c0_3, %c0_4], %2 {strides = array<i32>} : memref<16x9xf32, #tpu.memory_space<vmem>>, vector<16x8xf32>,
    %cst = arith.constant 1.000000e+00 : f32
    %4 = vector.broadcast %cst : f32 to vector<16x1xf32>
    %c0_5 = arith.constant 0 : index
    %c8 = arith.constant 8 : index
    %5 = vector.load %arg6[%c0_5, %c8] : memref<16x9xf32, #tpu.memory_space<vmem>>, vector<16x1xf32>
    tpu.vector_store %arg6[%c0_5, %c8], %4 {strides = array<i32>} : memref<16x9xf32, #tpu.memory_space<vmem>>, vector<16x1xf32>,
    %c0_6 = arith.constant 0 : index
    %c0_7 = arith.constant 0 : index
    %6 = vector.load %arg6[%c0_6, %c0_7] : memref<16x9xf32, #tpu.memory_space<vmem>>, vector<16x9xf32>
    %c0_8 = arith.constant 0 : index
    %c0_9 = arith.constant 0 : index
    %c0_10 = arith.constant 0 : index
    %7 = vector.load %arg3[%c0_8, %c0_9, %c0_10] : memref<1x16x4xf32, #tpu.memory_space<vmem>>, vector<1x16x4xf32>
    %8 = vector.shape_cast %7 : vector<1x16x4xf32> to vector<16x4xf32>
    %9 = tpu.transpose %6, [1, 0] : vector<16x9xf32> -> vector<9x16xf32>
    %cst_11 = arith.constant dense<0.000000e+00> : vector<9x9xf32>
    %10 = tpu.matmul %9, %6, %cst_11 {dimension_numbers = #tpu.dot_dimension_numbers<[1], [0], [0], [1], [0, 0, 1, 1], [], []>} : vector<9x16xf32>, vector<16x9xf32>, vector<9x9xf32> -> vector<9x9xf32>
    %11 = tpu.transpose %6, [1, 0] : vector<16x9xf32> -> vector<9x16xf32>
    %cst_12 = arith.constant dense<0.000000e+00> : vector<9x4xf32>
    %12 = tpu.matmul %11, %8, %cst_12 {dimension_numbers = #tpu.dot_dimension_numbers<[1], [0], [0], [1], [0, 0, 1, 1], [], []>} : vector<9x16xf32>, vector<16x4xf32>, vector<9x4xf32> -> vector<9x4xf32>
    %13 = tpu.iota {dimensions = array<i32: 0>} : vector<9x9xi32>
    %14 = tpu.iota {dimensions = array<i32: 1>} : vector<9x9xi32>
    %15 = arith.cmpi eq, %13, %14 : vector<9x9xi32>
    %cst_13 = arith.constant 0.000000e+00 : f32
    %16 = vector.broadcast %0 : f32 to vector<9x9xf32>
    %17 = vector.broadcast %cst_13 : f32 to vector<9x9xf32>
    %18 = arith.select %15, %16, %17 : vector<9x9xi1>, vector<9x9xf32>
    %19 = arith.addf %10, %18 : vector<9x9xf32>
    %20 = tpu.iota {dimensions = array<i32: 0>} : vector<9x9xi32>
    %21 = tpu.iota {dimensions = array<i32: 1>} : vector<9x9xi32>
    %22 = tpu.iota {dimensions = array<i32: 0>} : vector<9x4xi32>
    %23 = tpu.iota {dimensions = array<i32: 1>} : vector<1x9xi32>
    %c0_i32 = arith.constant 0 : i32
    %c9_i32 = arith.constant 9 : i32
    %24 = arith.addi %c0_i32, %c9_i32 : i32
    %c1_i32 = arith.constant 1 : i32
    %25:2 = scf.for %arg7 = %c0_i32 to %24 step %c1_i32 iter_args(%arg8 = %19, %arg9 = %12) -> (vector<9x9xf32>, vector<9x4xf32>)  : i32 {
      %34 = vector.broadcast %arg7 : i32 to vector<9x9xi32>
      %35 = arith.cmpi eq, %20, %34 : vector<9x9xi32>
      %cst_21 = arith.constant 0.000000e+00 : f32
      %36 = vector.broadcast %cst_21 : f32 to vector<9x9xf32>
      %37 = arith.select %35, %arg8, %36 : vector<9x9xi1>, vector<9x9xf32>
      %cst_22 = arith.constant dense<0.000000e+00> : vector<9xf32>
      %38 = vector.multi_reduction <add>, %37, %cst_22 [0] : vector<9x9xf32> to vector<9xf32>
      %39 = vector.shape_cast %38 : vector<9xf32> to vector<1x9xf32>
      %40 = vector.broadcast %arg7 : i32 to vector<9x4xi32>
      %41 = arith.cmpi eq, %22, %40 : vector<9x4xi32>
      %cst_23 = arith.constant 0.000000e+00 : f32
      %42 = vector.broadcast %cst_23 : f32 to vector<9x4xf32>
      %43 = arith.select %41, %arg9, %42 : vector<9x4xi1>, vector<9x4xf32>
      %cst_24 = arith.constant dense<0.000000e+00> : vector<4xf32>
      %44 = vector.multi_reduction <add>, %43, %cst_24 [0] : vector<9x4xf32> to vector<4xf32>
      %45 = vector.shape_cast %44 : vector<4xf32> to vector<1x4xf32>
      %46 = vector.broadcast %arg7 : i32 to vector<1x9xi32>
      %47 = arith.cmpi eq, %23, %46 : vector<1x9xi32>
      %cst_25 = arith.constant 0.000000e+00 : f32
      %48 = vector.broadcast %cst_25 : f32 to vector<1x9xf32>
      %49 = arith.select %47, %39, %48 : vector<1x9xi1>, vector<1x9xf32>
      %cst_26 = arith.constant dense<0.000000e+00> : vector<1xf32>
      %50 = vector.multi_reduction <add>, %49, %cst_26 [1] : vector<1x9xf32> to vector<1xf32>
      %51 = vector.shape_cast %50 : vector<1xf32> to vector<1x1xf32>
      %cst_27 = arith.constant 1.000000e+00 : f32
      %52 = vector.broadcast %cst_27 : f32 to vector<1x1xf32>
      %53 = arith.divf %52, %51 : vector<1x1xf32>
      %54 = vector.broadcast %53 : vector<1x1xf32> to vector<1x9xf32>
      %55 = arith.mulf %39, %54 : vector<1x9xf32>
      %56 = vector.broadcast %53 : vector<1x1xf32> to vector<1x4xf32>
      %57 = arith.mulf %45, %56 : vector<1x4xf32>
      %58 = vector.broadcast %arg7 : i32 to vector<9x9xi32>
      %59 = arith.cmpi eq, %21, %58 : vector<9x9xi32>
      %cst_28 = arith.constant 0.000000e+00 : f32
      %60 = vector.broadcast %cst_28 : f32 to vector<9x9xf32>
      %61 = arith.select %59, %arg8, %60 : vector<9x9xi1>, vector<9x9xf32>
      %cst_29 = arith.constant dense<0.000000e+00> : vector<9xf32>
      %62 = vector.multi_reduction <add>, %61, %cst_29 [1] : vector<9x9xf32> to vector<9xf32>
      %63 = vector.shape_cast %62 : vector<9xf32> to vector<9x1xf32>
      %64 = vector.broadcast %arg7 : i32 to vector<9x9xi32>
      %65 = arith.cmpi eq, %20, %64 : vector<9x9xi32>
      %66 = vector.broadcast %63 : vector<9x1xf32> to vector<9x9xf32>
      %67 = vector.broadcast %55 : vector<1x9xf32> to vector<9x9xf32>
      %68 = arith.mulf %66, %67 : vector<9x9xf32>
      %69 = arith.subf %arg8, %68 : vector<9x9xf32>
      %70 = vector.shape_cast %55 : vector<1x9xf32> to vector<1x9xf32>
      %71 = vector.broadcast %70 : vector<1x9xf32> to vector<9x9xf32>
      %72 = arith.select %65, %71, %69 : vector<9x9xi1>, vector<9x9xf32>
      %73 = vector.broadcast %arg7 : i32 to vector<9x4xi32>
      %74 = arith.cmpi eq, %22, %73 : vector<9x4xi32>
      %75 = vector.broadcast %63 : vector<9x1xf32> to vector<9x4xf32>
      %76 = vector.broadcast %57 : vector<1x4xf32> to vector<9x4xf32>
      %77 = arith.mulf %75, %76 : vector<9x4xf32>
      %78 = arith.subf %arg9, %77 : vector<9x4xf32>
      %79 = vector.shape_cast %57 : vector<1x4xf32> to vector<1x4xf32>
      %80 = vector.broadcast %79 : vector<1x4xf32> to vector<9x4xf32>
      %81 = arith.select %74, %80, %78 : vector<9x4xi1>, vector<9x4xf32>
      scf.yield %72, %81 : vector<9x9xf32>, vector<9x4xf32>
    }
    %c9_i32_14 = arith.constant 9 : i32
    %26 = vector.extract_strided_slice %25#1 {offsets = [0, 0], sizes = [8, 4], strides = [1, 1]} : vector<9x4xf32> to vector<8x4xf32>
    %c0_15 = arith.constant 0 : index
    %c0_16 = arith.constant 0 : index
    %c0_17 = arith.constant 0 : index
    %27 = vector.load %arg4[%c0_15, %c0_16, %c0_17] : memref<1x8x4xf32, #tpu.memory_space<vmem>>, vector<1x8x4xf32>
    %28 = vector.shape_cast %27 : vector<1x8x4xf32> to vector<8x4xf32>
    %29 = vector.shape_cast %26 : vector<8x4xf32> to vector<1x8x4xf32>
    tpu.vector_store %arg4[%c0_15, %c0_16, %c0_17], %29 {strides = array<i32>} : memref<1x8x4xf32, #tpu.memory_space<vmem>>, vector<1x8x4xf32>,
    %30 = vector.extract_strided_slice %25#1 {offsets = [8, 0], sizes = [1, 4], strides = [1, 1]} : vector<9x4xf32> to vector<1x4xf32>
    %c0_18 = arith.constant 0 : index
    %c0_19 = arith.constant 0 : index
    %c0_20 = arith.constant 0 : index
    %31 = vector.load %arg5[%c0_18, %c0_19, %c0_20] : memref<1x1x4xf32, #tpu.memory_space<vmem>>, vector<1x1x4xf32>
    %32 = vector.shape_cast %31 : vector<1x1x4xf32> to vector<1x4xf32>
    %33 = vector.shape_cast %30 : vector<1x4xf32> to vector<1x1x4xf32>
    tpu.vector_store %arg5[%c0_18, %c0_19, %c0_20], %33 {strides = array<i32>} : memref<1x1x4xf32, #tpu.memory_space<vmem>>, vector<1x1x4xf32>,
    return
  }
  func.func @transform_0(%arg0: i32) -> i32 {
    %c0_i32 = arith.constant 0 : i32
    %c0_i32_0 = arith.constant 0 : i32
    return %c0_i32 : i32
  }
  func.func @transform_1(%arg0: i32) -> (i32, i32, i32) {
    %c0_i32 = arith.constant 0 : i32
    %c0_i32_0 = arith.constant 0 : i32
    %c0_i32_1 = arith.constant 0 : i32
    return %arg0, %c0_i32, %c0_i32_0 : i32, i32, i32
  }
  func.func @transform_2(%arg0: i32) -> (i32, i32, i32) {
    %c0_i32 = arith.constant 0 : i32
    %c0_i32_0 = arith.constant 0 : i32
    %c0_i32_1 = arith.constant 0 : i32
    return %arg0, %c0_i32, %c0_i32_0 : i32, i32, i32
  }
  func.func @transform_3(%arg0: i32) -> (i32, i32, i32) {
    %c0_i32 = arith.constant 0 : i32
    %c0_i32_0 = arith.constant 0 : i32
    %c0_i32_1 = arith.constant 0 : i32
    return %arg0, %c0_i32, %c0_i32_0 : i32, i32, i32
  }
  func.func @transform_4(%arg0: i32) -> (i32, i32, i32) {
    %c0_i32 = arith.constant 0 : i32
    %c0_i32_0 = arith.constant 0 : i32
    %c0_i32_1 = arith.constant 0 : i32
    return %arg0, %c0_i32, %c0_i32_0 : i32, i32, i32
  }
}

</mosaic_0001>

<llo_original>
// kernel: tpu_custom_call.1
$region0: #{tpu_custom_call.1}
  #allocation0 [shape = 'u32[]', space=smem, size = 0x4, offset = 0x4, fixed_abs, tag = 'smem constant byte address 0x4 - core index']
  #allocation1 [shape = 'u32[72,128]{1,0:T(1,128)}', space=vmem, size = 0x9000, scoped, tag = 'internal scratch']
  #allocation2 [shape = 'f32[16,9]{1,0:T(8,128)}', space=vmem, size = 0x2000, scoped, tag = 'scratch operand']
  #allocation3 [shape = 'f32[1]{0:T(128)S(6)}', space=smem, size = 0x200, scoped, tag = 'scoped memory for tpu_custom_call.1']
  %s0 = inlined_call_operand.<no memory space> [shape: f32[1], index: 0, kind: input, shape index: {}]
  %s1 = inlined_call_operand.vmem [shape: f32[2,16,8], index: 1, kind: input, shape index: {}]
  %s2 = inlined_call_operand.vmem [shape: f32[2,16,4], index: 2, kind: input, shape index: {}]
  %s3 = inlined_call_operand.vmem [shape: f32[2,8,4], index: 3, kind: output, shape index: {0}]
  %s4 = inlined_call_operand.hbm [shape: f32[2,1,4], index: 4, kind: output, shape index: {1}]
  %5 = xla_tuple %s3, %s4
  %s6 = sld [smem:[#allocation0]]
  $region60: #{tpu_custom_call.1} parent=0
    _
  %s8 = ssub.s32 1, %s6
  %s9 = scalar_select 0, %s8, %s6
  %10 = sst [smem:[#allocation3]] %s0
  $region1: #{tpu_custom_call.1} parent=0
    #allocation4 [shape = 'u8[1024]{0}', space=vmem, size = 0x400, scoped, tag = 'output window, operand 1']
    #allocation5 [shape = 's32[2]{0}', space=sflag, size = 0x8, scoped, tag = 'scoped memory for tpu_custom_call.1']
    %11 = vsyncpa [#allocation5], 0
    %s12 = scalar_lea.sflag [#allocation5], 1
    %13 = vsyncpa %s12, 0
    loop: start=0, step=1, limit=4
    $region2: #{tpu_custom_call.1} parent=1 // loop_pre_header
      _
    $region3: #{tpu_custom_call.1} parent=1 // loop_header
      %s15 = sphi 0, %s19
      %p16 = scmp.ge.s32.totalorder %s15, 4
      %s23 = sphi 0, %s23
      %s25 = sphi 0, %s23
      %s26 = sphi 0, %s25
      %s40 = sphi 0, %s26
      %s46 = sphi 0, %s48
      %s49 = sphi 0, %s46
      %s50 = sphi 0, %s49
      %s66 = sphi 0, %s50
      %s72 = sphi 0, %s74
      %s75 = sphi 0, %s72
      %s76 = sphi 0, %s75
      %s92 = sphi 0, %s76
      %s98 = sphi 0, %s100
      %s101 = sphi 0, %s98
      %s102 = sphi 0, %s101
      %s118 = sphi 0, %s102
      %s124 = sphi 0, %s126
      %s127 = sphi 0, %s124
      %s128 = sphi 0, %s127
      %s144 = sphi 0, %s128
    $region4: #{tpu_custom_call.1} parent=1 // loop_header_branch
      %18 = sbr.rel (%p16) target = $region8
    $region5: #{tpu_custom_call.1} parent=1 // loop_body
      %s20 = ssub.s32 %s15, 1
      %s21 = ssub.s32 %s15, 2
      %s22 = sadd.s32 %s15, 1
      %s24 = sadd.s32 %s23, 1
      %p27 = scmp.eq.s32.totalorder %s15, 1
      %p28 = scmp.ne.s32.totalorder %s23, %s25
      %p29 = scmp.eq.s32.totalorder %s15, 0
      %p30 = por %p28, %p29
      %p31 = scmp.ne.s32.totalorder %s23, %s25
      %p32 = scmp.eq.s32.totalorder %s20, 1
      %p33 = por %p31, %p32
      %p34 = scmp.ne.s32.totalorder %s25, %s26
      %p35 = scmp.eq.s32.totalorder %s20, 0
      %p36 = por %p34, %p35
      %p37 = scmp.ne.s32.totalorder %s25, %s26
      %p38 = scmp.eq.s32.totalorder %s21, 1
      %p39 = por %p37, %p38
      %p41 = scmp.ne.s32.totalorder %s26, %s40
      %p42 = scmp.eq.s32.totalorder %s21, 0
      %p43 = por %p41, %p42
      %s44 = ssub.s32 %s15, %s22
      %p45 = scmp.eq.s32.totalorder %s44, 0
      %s47 = sadd.s32 %s46, 1
      %s48 = scalar_select %p45, %s46, %s47
      %p51 = pneg %p45
      %p52 = scmp.eq.s32.totalorder %s15, 1
      %p53 = por %p51, %p52
      %p54 = scmp.ne.s32.totalorder %s46, %s49
      %p55 = scmp.eq.s32.totalorder %s15, 0
      %p56 = por %p54, %p55
      %p57 = scmp.ne.s32.totalorder %s46, %s49
      %p58 = scmp.eq.s32.totalorder %s20, 1
      %p59 = por %p57, %p58
      %p60 = scmp.ne.s32.totalorder %s49, %s50
      %p61 = scmp.eq.s32.totalorder %s20, 0
      %p62 = por %p60, %p61
      %p63 = scmp.ne.s32.totalorder %s49, %s50
      %p64 = scmp.eq.s32.totalorder %s21, 1
      %p65 = por %p63, %p64
      %p67 = scmp.ne.s32.totalorder %s50, %s66
      %p68 = scmp.eq.s32.totalorder %s21, 0
      %p69 = por %p67, %p68
      %s70 = ssub.s32 %s15, %s22
      %p71 = scmp.eq.s32.totalorder %s70, 0
      %s73 = sadd.s32 %s72, 1
      %s74 = scalar_select %p71, %s72, %s73
      %p77 = pneg %p71
      %p78 = scmp.eq.s32.totalorder %s15, 1
      %p79 = por %p77, %p78
      %p80 = scmp.ne.s32.totalorder %s72, %s75
      %p81 = scmp.eq.s32.totalorder %s15, 0
      %p82 = por %p80, %p81
      %p83 = scmp.ne.s32.totalorder %s72, %s75
      %p84 = scmp.eq.s32.totalorder %s20, 1
      %p85 = por %p83, %p84
      %p86 = scmp.ne.s32.totalorder %s75, %s76
      %p87 = scmp.eq.s32.totalorder %s20, 0
      %p88 = por %p86, %p87
      %p89 = scmp.ne.s32.totalorder %s75, %s76
      %p90 = scmp.eq.s32.totalorder %s21, 1
      %p91 = por %p89, %p90
      %p93 = scmp.ne.s32.totalorder %s76, %s92
      %p94 = scmp.eq.s32.totalorder %s21, 0
      %p95 = por %p93, %p94
      %s96 = ssub.s32 %s15, %s22
      %p97 = scmp.eq.s32.totalorder %s96, 0
      %s99 = sadd.s32 %s98, 1
      %s100 = scalar_select %p97, %s98, %s99
      %p103 = pneg %p97
      %p104 = scmp.eq.s32.totalorder %s15, 1
      %p105 = por %p103, %p104
      %p106 = scmp.ne.s32.totalorder %s98, %s101
      %p107 = scmp.eq.s32.totalorder %s15, 0
      %p108 = por %p106, %p107
      %p109 = scmp.ne.s32.totalorder %s98, %s101
      %p110 = scmp.eq.s32.totalorder %s20, 1
      %p111 = por %p109, %p110
      %p112 = scmp.ne.s32.totalorder %s101, %s102
      %p113 = scmp.eq.s32.totalorder %s20, 0
      %p114 = por %p112, %p113
      %p115 = scmp.ne.s32.totalorder %s101, %s102
      %p116 = scmp.eq.s32.totalorder %s21, 1
      %p117 = por %p115, %p116
      %p119 = scmp.ne.s32.totalorder %s102, %s118
      %p120 = scmp.eq.s32.totalorder %s21, 0
      %p121 = por %p119, %p120
      %s122 = ssub.s32 %s15, %s22
      %p123 = scmp.eq.s32.totalorder %s122, 0
      %s125 = sadd.s32 %s124, 1
      %s126 = scalar_select %p123, %s124, %s125
      %p129 = pneg %p123
      %p130 = scmp.eq.s32.totalorder %s15, 1
      %p131 = por %p129, %p130
      %p132 = scmp.ne.s32.totalorder %s124, %s127
      %p133 = scmp.eq.s32.totalorder %s15, 0
      %p134 = por %p132, %p133
      %p135 = scmp.ne.s32.totalorder %s124, %s127
      %p136 = scmp.eq.s32.totalorder %s20, 1
      %p137 = por %p135, %p136
      %p138 = scmp.ne.s32.totalorder %s127, %s128
      %p139 = scmp.eq.s32.totalorder %s20, 0
      %p140 = por %p138, %p139
      %p141 = scmp.ne.s32.totalorder %s127, %s128
      %p142 = scmp.eq.s32.totalorder %s21, 1
      %p143 = por %p141, %p142
      %p145 = scmp.ne.s32.totalorder %s128, %s144
      %p146 = scmp.eq.s32.totalorder %s21, 0
      %p147 = por %p145, %p146
      %p148 = scmp.le.s32.totalorder 1, %s15
      %p149 = scmp.lt.s32.totalorder %s15, 3
      %p150 = pnand %p148, %p149
      %p151 = pneg %p150
      // Predicated region
      $region9: #{tpu_custom_call.1} parent=5 // pred_check
        _
      $region10: #{tpu_custom_call.1} parent=5 // pred_check_branch
        %153 = sbr.rel (%p150) target = $region12
      $region11: #{tpu_custom_call.1} parent=5 // pred_region
        %s154 = ssub.s32 %s15, 1
        // Predicated region
        $region13: #{tpu_custom_call.1} parent=11 // pred_check
          %p155 = pneg %p36
        $region14: #{tpu_custom_call.1} parent=11 // pred_check_branch
          %157 = sbr.rel (%p155) target = $region16
        $region15: #{tpu_custom_call.1} parent=11 // pred_region
          _
        $region16: #{tpu_custom_call.1} parent=11 // pred_fallthru
          _
      $region12: #{tpu_custom_call.1} parent=5 // pred_fallthru
        _
      %p158 = scmp.lt.s32.totalorder %s15, 2
      // Predicated region
      $region17: #{tpu_custom_call.1} parent=5 // pred_check
        %p159 = pneg %p158
      $region18: #{tpu_custom_call.1} parent=5 // pred_check_branch
        %161 = sbr.rel (%p159) target = $region20
      $region19: #{tpu_custom_call.1} parent=5 // pred_region
        // Predicated region
        $region21: #{tpu_custom_call.1} parent=19 // pred_check
          %p162 = pneg %p56
        $region22: #{tpu_custom_call.1} parent=19 // pred_check_branch
          %164 = sbr.rel (%p162) target = $region24
        $region23: #{tpu_custom_call.1} parent=19 // pred_region
          %p165 = scmp.lt.s32.totalorder %s15, 1
          %s166 = scalar_select %p165, %s15, 1
          %s167 = smul.addr %s166, 2
          %s168 = smul.addr %s167, 8
          %s169 = scalar_lea.vmem %s1, %s168
        $region24: #{tpu_custom_call.1} parent=19 // pred_fallthru
          _
        // Predicated region
        $region25: #{tpu_custom_call.1} parent=19 // pred_check
          %p170 = pneg %p82
        $region26: #{tpu_custom_call.1} parent=19 // pred_check_branch
          %172 = sbr.rel (%p170) target = $region28
        $region27: #{tpu_custom_call.1} parent=19 // pred_region
          %p173 = scmp.lt.s32.totalorder %s15, 1
          %s174 = scalar_select %p173, %s15, 1
          %s175 = smul.addr %s174, 2
          %s176 = smul.addr %s175, 8
          %s177 = scalar_lea.vmem %s2, %s176
        $region28: #{tpu_custom_call.1} parent=19 // pred_fallthru
          _
      $region20: #{tpu_custom_call.1} parent=5 // pred_fallthru
        _
      %p178 = scmp.le.s32.totalorder 1, %s15
      %p179 = scmp.lt.s32.totalorder %s15, 3
      %p180 = pnand %p178, %p179
      %p181 = pneg %p180
      // Predicated region
      $region29: #{tpu_custom_call.1} parent=5 // pred_check
        _
      $region30: #{tpu_custom_call.1} parent=5 // pred_check_branch
        %183 = sbr.rel (%p180) target = $region32
      $region31: #{tpu_custom_call.1} parent=5 // pred_region
        %s184 = ssub.s32 %s15, 1
        %p185 = pneg %p36
        %p186 = pneg %p33
        %p187 = scmp.lt.s32.totalorder %s20, 1
        %s188 = scalar_select %p187, %s20, 1
        %s189 = smul.addr %s188, 2
        %s190 = smul.addr %s189, 8
        %s191 = scalar_lea.vmem %s1, %s190
        %p192 = pneg %p62
        %p193 = pneg %p59
        %p194 = scmp.lt.s32.totalorder %s20, 1
        %s195 = scalar_select %p194, %s20, 1
        %s196 = smul.addr %s195, 2
        %s197 = smul.addr %s196, 8
        %s198 = scalar_lea.vmem %s2, %s197
        %p199 = pneg %p88
        %p200 = pneg %p85
        %p201 = pneg %p114
        %p202 = pneg %p111
        %p203 = scmp.lt.s32.totalorder %s20, 1
        %s204 = scalar_select %p203, %s20, 1
        %s205 = smul.addr %s204, 8
        %s206 = scalar_lea.vmem %s3, %s205
        %p207 = pneg %p140
        %p208 = pneg %p137
        %s209 = sand.u32 %s127, 1
        %s210 = scalar_lea.sflag [#allocation5], %s209
        %s211 = sand.u32 %s127, 1
        %s212 = scalar_lea.vmem [#allocation4], %s211
        %p213 = scmp.lt.s32.totalorder %s20, 1
        %s214 = scalar_select %p213, %s20, 1
        %s215 = smul.addr %s214, 2
        %s216 = smul.addr %s215, 8
        %s217 = scalar_lea.vmem %s1, %s216
        %p218 = scmp.lt.s32.totalorder %s20, 1
        %s219 = scalar_select %p218, %s20, 1
        %s220 = smul.addr %s219, 2
        %s221 = smul.addr %s220, 8
        %s222 = scalar_lea.vmem %s2, %s221
        %p223 = scmp.lt.s32.totalorder %s20, 1
        %s224 = scalar_select %p223, %s20, 1
        %s225 = smul.addr %s224, 8
        %s226 = scalar_lea.vmem %s3, %s225
        %s227 = sld [smem:[#allocation3]]
        %v228 = vld [vmem:[%s217] sm:$0xff]
        %v229 = vld [vmem:[%s217 + $0x8] sm:$0xff]
        %vm230 = vcmask 64512
        %231 = vst.msk [vmem:[#allocation2] sm:$0xff] %vm230, %v228
        %232 = vst.msk [vmem:[#allocation2 + $0x8] sm:$0xff] %vm230, %v229
        %vm233 = vcmask 72768
        %234 = vst.msk [vmem:[#allocation2] sm:$0xff] %vm233, 1.0
        %235 = vst.msk [vmem:[#allocation2 + $0x8] sm:$0xff] %vm233, 1.0
        %v236 = vld [vmem:[#allocation2] sm:$0xff]
        %v237 = vld [vmem:[#allocation2 + $0x8] sm:$0xff]
        %v238 = vld [vmem:[%s222] sm:$0xff]
        %v239 = vld [vmem:[%s222 + $0x8] sm:$0xff]
        %240 = vxpose.xlu0.b32.start [1/16] %v236, 128
        %241 = vxpose.xlu0.b32.cont [2/16] %v237, 128
        %242 = vxpose.xlu0.b32.cont [3/16] 0.0, 128
        %243 = vxpose.xlu0.b32.cont [4/16] 0.0, 128
        %244 = vxpose.xlu0.b32.cont [5/16] 0.0, 128
        %245 = vxpose.xlu0.b32.cont [6/16] 0.0, 128
        %246 = vxpose.xlu0.b32.cont [7/16] 0.0, 128
        %247 = vxpose.xlu0.b32.cont [8/16] 0.0, 128
        %248 = vxpose.xlu0.b32.cont [9/16] 0.0, 128
        %249 = vxpose.xlu0.b32.cont [10/16] 0.0, 128
        %250 = vxpose.xlu0.b32.cont [11/16] 0.0, 128
        %251 = vxpose.xlu0.b32.cont [12/16] 0.0, 128
        %252 = vxpose.xlu0.b32.cont [13/16] 0.0, 128
        %253 = vxpose.xlu0.b32.cont [14/16] 0.0, 128
        %254 = vxpose.xlu0.b32.cont [15/16] 0.0, 128
        %255 = vxpose.xlu0.b32.end [16/16] 0.0, 128
        %v256 = vpop.trf.xlu0
        %v257 = vpop.trf.xlu0
        %v258 = vpop.trf.xlu0
        %v259 = vpop.trf.xlu0
        %v260 = vpop.trf.xlu0
        %v261 = vpop.trf.xlu0
        %v262 = vpop.trf.xlu0
        %v263 = vpop.trf.xlu0
        %v264 = vpop.trf.xlu0
        %v265 = vpop.trf.xlu0
        %v266 = vpop.trf.xlu0
        %v267 = vpop.trf.xlu0
        %v268 = vpop.trf.xlu0
        %v269 = vpop.trf.xlu0
        %v270 = vpop.trf.xlu0
        %v271 = vpop.trf.xlu0
        %vm272 = vcmask 130048
        %v274 = vsel %vm272, %v256, 0
        %v277 = vsel %vm272, %v257, 0
        %279 = vmatpush.msra.mxu0 0.0
        %280 = vmatpush.msra.mxu0 0.0
        %281 = vmatpush.msra.mxu0 0.0
        %282 = vmatpush.msra.mxu0 0.0
        %283 = vmatpush.msra.mxu0 0.0
        %284 = vmatpush.msra.mxu0 0.0
        %285 = vmatpush.msra.mxu0 0.0
        %286 = vmatpush.msra.mxu0 0.0
        %287 = vmatpush.msra.mxu0 0.0
        %288 = vmatpush.msra.mxu0 0.0
        %289 = vmatpush.msra.mxu0 0.0
        %290 = vmatpush.msra.mxu0 0.0
        %291 = vmatpush.msra.mxu0 0.0
        %292 = vmatpush.msra.mxu0 0.0
        %293 = vmatpush.msra.mxu0 %v239
        %294 = vmatpush.msra.mxu0 %v238
        %295 = vmatmul.f32.gmra.mxu0 %v274
        %v296 = vpop.f32.mrf.mxu0
        %v297 = vadd.f32 0.0, %v296
        %298 = vmatmul.f32.gmra.mxu0 %v277
        %v299 = vpop.f32.mrf.mxu0
        %v300 = vadd.f32 0.0, %v299
        %301 = vdwg.mxu0
        %v302 = vlaneseq
        %v303 = vshrl.u32 %v302, 7
        %v304 = vadd.s32 %v303, 8
        %v305 = vlaneseq
        %v306 = vand.u32 %v305, 127
        %vm307 = vcmp.eq.s32.totalorder %v303, %v306
        %vm308 = vcmp.eq.s32.totalorder %v304, %v306
        %v309 = vstv %s227
        %v310 = vsel %vm307, %v309, 0.0
        %v311 = vsel %vm308, %v309, 0.0
        %312 = vmatpush.msra.mxu0 0.0
        %313 = vmatpush.msra.mxu0 0.0
        %314 = vmatpush.msra.mxu0 0.0
        %315 = vmatpush.msra.mxu0 0.0
        %316 = vmatpush.msra.mxu0 0.0
        %317 = vmatpush.msra.mxu0 0.0
        %318 = vmatpush.msra.mxu0 0.0
        %319 = vmatpush.msra.mxu0 0.0
        %320 = vmatpush.msra.mxu0 0.0
        %321 = vmatpush.msra.mxu0 0.0
        %322 = vmatpush.msra.mxu0 0.0
        %323 = vmatpush.msra.mxu0 0.0
        %324 = vmatpush.msra.mxu0 0.0
        %325 = vmatpush.msra.mxu0 0.0
        %326 = vmatpush.msra.mxu0 %v237
        %327 = vmatpush.msra.mxu0 %v236
        %328 = vmatmul.f32.gmra.mxu0 %v274
        %v329 = vpop.f32.mrf.mxu0
        %v330 = vadd.f32 %v310, %v329
        %331 = vmatmul.f32.gmra.mxu0 %v277
        %v332 = vpop.f32.mrf.mxu0
        %v333 = vadd.f32 %v311, %v332
        %334 = vdwg.mxu0
        loop: start=0, step=1, limit=9
        $region33: #{tpu_custom_call.1} parent=31 // loop_pre_header
          _
        $region34: #{tpu_custom_call.1} parent=31 // loop_header
          %s336 = sphi 0, %s340
          %p337 = scmp.ge.s32.totalorder %s336, 9
          %v341 = vphi %v330, %v408
          %v342 = vphi %v333, %v409
          %v343 = vphi %v297, %v414
          %v344 = vphi %v300, %v415
        $region35: #{tpu_custom_call.1} parent=31 // loop_header_branch
          %339 = sbr.rel (%p337) target = $region39
        $region36: #{tpu_custom_call.1} parent=31 // loop_body
          %v345 = vstv %s336
          %vm346 = vcmp.eq.s32.totalorder %v303, %v345
          %vm347 = vcmp.eq.s32.totalorder %v304, %v345
          %v348 = vsel %vm346, %v341, 0.0
          %v349 = vsel %vm347, %v342, 0.0
          %vm350 = vcmask 72704
          %v351 = vsel %vm350, %v348, 0.0
          %vm352 = vcmask 65536
          %v353 = vsel %vm352, %v349, 0.0
          %v354 = vadd.f32 %v351, %v353
          %v355 = vrot.slane %v354, 4
          %v356 = vadd.f32 %v354, %v355
          %v357 = vrot.slane %v356, 2
          %v358 = vadd.f32 %v356, %v357
          %v359 = vrot.slane %v358, 1
          %v360 = vadd.f32 %v358, %v359
          %v361 = vsel %vm346, %v343, 0.0
          %v362 = vsel %vm347, %v344, 0.0
          %vm363 = vcmask 31744
          %v364 = vsel %vm363, %v361, 0.0
          %vm365 = vcmask 24576
          %v366 = vsel %vm365, %v362, 0.0
          %v367 = vadd.f32 %v364, %v366
          %v368 = vrot.slane %v367, 4
          %v369 = vadd.f32 %v367, %v368
          %v370 = vrot.slane %v369, 2
          %v371 = vadd.f32 %v369, %v370
          %v372 = vrot.slane %v371, 1
          %v373 = vadd.f32 %v371, %v372
          %vm374 = vcmp.eq.s32.totalorder %v306, %v345
          %v375 = vsel %vm374, %v360, 0.0
          %v376 = vsel %vm350, %v375, 0.0
          %377 = vadd.xlane.f32.xlu0 %v376
          %v378 = vpop.xlane.xlu0 %377
          %v379 = vrcp.pop %v378
          %v380 = vmul.f32 %v378, %v379
          %v381 = vsub.f32 1.0, %v380
          %v382 = vmul.f32 %v379, %v381
          %v383 = vadd.f32 %v379, %v382
          %vm384 = vweird.f32 %v378
          %vm385 = vweird.f32 %v379
          %vm386 = vmor %vm384, %vm385
          %v387 = vsel %vm386, %v379, %v383
          %v388 = vand.u32 2147483647, %v378
          %vm389 = vcmp.eq.f32.partialorder %v388, 8.507059e+37
          %v390 = vand.u32 %v378, 2147483648
          %v391 = vor.u32 1.1754944e-38, %v390
          %v392 = vsel %vm389, %v391, %v387
          %v393 = vmul.f32 1.0, %v392
          %v394 = vmul.f32 %v360, %v393
          %v395 = vmul.f32 %v373, %v393
          %v396 = vsel %vm374, %v341, 0.0
          %v397 = vsel %vm374, %v342, 0.0
          %v398 = vsel %vm350, %v396, 0.0
          %399 = vadd.xlane.f32.xlu0 %v398
          %v400 = vpop.xlane.xlu0 %399
          %v401 = vsel %vm352, %v397, 0.0
          %402 = vadd.xlane.f32.xlu0 %v401
          %v403 = vpop.xlane.xlu0 %402
          %v404 = vmul.f32 %v400, %v394
          %v405 = vmul.f32 %v403, %v394
          %v406 = vsub.f32 %v341, %v404
          %v407 = vsub.f32 %v342, %v405
          %v408 = vsel %vm346, %v394, %v406
          %v409 = vsel %vm347, %v394, %v407
          %v410 = vmul.f32 %v400, %v395
          %v411 = vmul.f32 %v403, %v395
          %v412 = vsub.f32 %v343, %v410
          %v413 = vsub.f32 %v344, %v411
          %v414 = vsel %vm346, %v395, %v412
          %v415 = vsel %vm347, %v395, %v413
        $region37: #{tpu_custom_call.1} parent=31 // loop_footer
          %s340 = sadd.s32 1, %s336
        $region38: #{tpu_custom_call.1} parent=31 // loop_footer_branch
          %335 = sbr.rel target = $region34
        $region39: #{tpu_custom_call.1} parent=31 // loop_exit
          _
        %vm416 = vcmask 31744
        %417 = vst.msk [vmem:[%s226] sm:$0xff] %vm416, %v343
        %vm418 = vcmask 24576
        %419 = vst.msk [vmem:[%s212] sm:$0x1] %vm418, %v344
        %p420 = scmp.lt.s32.totalorder %s20, 1
        %s421 = scalar_select %p420, %s20, 1
        %s422 = smul.addr %s421, 8
        %s423 = scalar_lea.vmem %s3, %s422
        %s424 = sand.u32 %s127, 1
        %s425 = scalar_lea.sflag [#allocation5], %s424
        %s426 = sand.u32 %s127, 1
        %s427 = scalar_lea.vmem [#allocation4], %s426
        // Predicated region
        $region40: #{tpu_custom_call.1} parent=31 // pred_check
          %p428 = pneg %p111
        $region41: #{tpu_custom_call.1} parent=31 // pred_check_branch
          %430 = sbr.rel (%p428) target = $region43
        $region42: #{tpu_custom_call.1} parent=31 // pred_region
          _
        $region43: #{tpu_custom_call.1} parent=31 // pred_fallthru
          _
        // Predicated region
        $region44: #{tpu_custom_call.1} parent=31 // pred_check
          %p431 = pneg %p137
        $region45: #{tpu_custom_call.1} parent=31 // pred_check_branch
          %433 = sbr.rel (%p431) target = $region47
        $region46: #{tpu_custom_call.1} parent=31 // pred_region
          %435 = vsyncadd %s425, 0
          %s436 = scalar_lea.hbm %s4, %s20
          %s438 = sshll.u32 %s427, 4
          %s439 = int_to_ptr.vmem [resolvable:$true] %s438
          %s440 = sshll.u32 %s436, 4
          %s441 = int_to_ptr.hbm [resolvable:$true] %s440
          %443 = dma.vmem_to_hbm [thread:$0]  %s439, 16, %s441, %s425
        $region47: #{tpu_custom_call.1} parent=31 // pred_fallthru
          _
      $region32: #{tpu_custom_call.1} parent=5 // pred_fallthru
        _
      %p444 = scmp.le.s32.totalorder 2, %s15
      // Predicated region
      $region48: #{tpu_custom_call.1} parent=5 // pred_check
        %p445 = pneg %p444
      $region49: #{tpu_custom_call.1} parent=5 // pred_check_branch
        %447 = sbr.rel (%p445) target = $region51
      $region50: #{tpu_custom_call.1} parent=5 // pred_region
        %s448 = ssub.s32 %s15, 2
        // Predicated region
        $region52: #{tpu_custom_call.1} parent=50 // pred_check
          %p449 = pneg %p117
        $region53: #{tpu_custom_call.1} parent=50 // pred_check_branch
          %451 = sbr.rel (%p449) target = $region55
        $region54: #{tpu_custom_call.1} parent=50 // pred_region
          %p452 = scmp.lt.s32.totalorder %s21, 1
          %s453 = scalar_select %p452, %s21, 1
          %s454 = smul.addr %s453, 8
          %s455 = scalar_lea.vmem %s3, %s454
        $region55: #{tpu_custom_call.1} parent=50 // pred_fallthru
          _
        // Predicated region
        $region56: #{tpu_custom_call.1} parent=50 // pred_check
          %p456 = pneg %p143
        $region57: #{tpu_custom_call.1} parent=50 // pred_check_branch
          %458 = sbr.rel (%p456) target = $region59
        $region58: #{tpu_custom_call.1} parent=50 // pred_region
          %s459 = sand.u32 %s128, 1
          %s460 = scalar_lea.sflag [#allocation5], %s459
          %s461 = sand.u32 %s128, 1
          %s462 = scalar_lea.vmem [#allocation4], %s461
          %464 = dma.done %s460, 16
        $region59: #{tpu_custom_call.1} parent=50 // pred_fallthru
          _
      $region51: #{tpu_custom_call.1} parent=5 // pred_fallthru
        _
    $region6: #{tpu_custom_call.1} parent=1 // loop_footer
      %s19 = sadd.s32 1, %s15
    $region7: #{tpu_custom_call.1} parent=1 // loop_footer_branch
      %14 = sbr.rel target = $region3
    $region8: #{tpu_custom_call.1} parent=1 // loop_exit
      _
    %465 = vsyncpa [#allocation5], 1
    %s466 = scalar_lea.sflag [#allocation5], 1
    %467 = vsyncpa %s466, 1

</llo_original>
